<compile_context>
chip_gen: v6e
topology: v6e:2x2x1
jax: 0.10.0
libtpu: 0.0.40
codegen_flags: <defaults>
</compile_context>

<pallas_src>
import functools

import jax
import jax.numpy as jnp
from jax.experimental import pallas as pl
from jax.experimental.pallas import tpu as pltpu


# ----------------------------------------------------------------------------
# Fused Pallas kernel: entire GCN forward on VMEM-resident tiles
# ----------------------------------------------------------------------------
def _gcn_fused_kernel(
    x_ref, a_ref, pool_ref,
    w0_ref, b0_ref,
    wg1_ref, bg1_ref, wg2_ref, bg2_ref, wg3_ref, bg3_ref,
    w1_ref, b1_ref, w2_ref, b2_ref,
    o_ref,
):
    f32 = jnp.float32
    a_norm = a_ref[...]                       # (N, N) normalized adjacency

    # lin0 + relu : (N, F) @ (F, D) + b
    h = jnp.dot(x_ref[...], w0_ref[...], preferred_element_type=f32)
    h = jnp.maximum(h + b0_ref[...], 0.0)

    # 3 x GCNConv + relu : relu(A_norm @ (h @ W^T) + b)
    # both matmuls chained back-to-back on the MXU, intermediate never leaves VMEM
    for wg_ref, bg_ref in ((wg1_ref, bg1_ref),
                           (wg2_ref, bg2_ref),
                           (wg3_ref, bg3_ref)):
        hw = jnp.dot(h, wg_ref[...], preferred_element_type=f32)
        h = jnp.dot(a_norm, hw, preferred_element_type=f32)
        h = jnp.maximum(h + bg_ref[...], 0.0)

    # SumAggregation over graphs: pool is a (G, N) 0/1 matrix -> (G, D)
    g = jnp.dot(pool_ref[...], h, preferred_element_type=f32)

    # lin1 + relu
    g = jnp.dot(g, w1_ref[...], preferred_element_type=f32)
    g = jnp.maximum(g + b1_ref[...], 0.0)

    # lin2 (output width 1): VPU multiply + lane reduction instead of a
    # wasteful (G, D) @ (D, 1) MXU matmul.  w2_ref is (1, D).
    out = jnp.sum(g * w2_ref[...], axis=-1, keepdims=True) + b2_ref[...]
    o_ref[...] = out.astype(o_ref.dtype)


def _full_spec(shape):
    nd = len(shape)
    return pl.BlockSpec(shape, lambda i, _nd=nd: (0,) * _nd)


def gcn_fused(x, a_norm, pool, p):
    """One pallas_call for the whole forward.  Returns (G, 1) float32."""
    num_graphs = pool.shape[0]
    args = (
        x, a_norm, pool,
        p["w0t"], p["b0"],
        p["wg1t"], p["bg1"], p["wg2t"], p["bg2"], p["wg3t"], p["bg3"],
        p["w1t"], p["b1"], p["w2"], p["b2"],
    )
    args = tuple(a.astype(jnp.float32) for a in args)
    return pl.pallas_call(
        _gcn_fused_kernel,
        out_shape=jax.ShapeDtypeStruct((num_graphs, 1), jnp.float32),
        grid=(1,),
        in_specs=[_full_spec(a.shape) for a in args],
        out_specs=_full_spec((num_graphs, 1)),
        compiler_params=pltpu.CompilerParams(
            dimension_semantics=("arbitrary",)),
    )(*args)


# ----------------------------------------------------------------------------
# One-time parameter / graph-structure preparation (outside the jit hot path)
# ----------------------------------------------------------------------------
def prepare_params(params):
    """Pre-transpose weights once so no .T / transpose op runs per forward."""
    return {
        "w0t": jnp.asarray(params["w0"]).T, "b0": jnp.asarray(params["b0"]).reshape(1, -1),
        "wg1t": jnp.asarray(params["wg1"]).T, "bg1": jnp.asarray(params["bg1"]).reshape(1, -1),
        "wg2t": jnp.asarray(params["wg2"]).T, "bg2": jnp.asarray(params["bg2"]).reshape(1, -1),
        "wg3t": jnp.asarray(params["wg3"]).T, "bg3": jnp.asarray(params["bg3"]).reshape(1, -1),
        "w1t": jnp.asarray(params["w1"]).T, "b1": jnp.asarray(params["b1"]).reshape(1, -1),
        "w2": jnp.asarray(params["w2"]),              # (1, D): used as a row for VPU reduction
        "b2": jnp.asarray(params["b2"]).reshape(1, 1),
    }


def build_graph_operators(edge_index, batch, num_nodes, num_graphs):
    """Dense D^-1/2 (A+I) D^-1/2 and the (G, N) sum-pooling matrix.

    Plain-JAX glue (scatter-add), computed once per graph batch, not per call.
    """
    src, dst = edge_index[0], edge_index[1]
    adj = jnp.zeros((num_nodes, num_nodes), jnp.float32).at[dst, src].add(1.0)
    adj = adj + jnp.eye(num_nodes, dtype=jnp.float32)          # self-loops
    deg = adj.sum(axis=1)
    d_inv_sqrt = jnp.where(deg > 0, 1.0 / jnp.sqrt(deg), 0.0)
    a_norm = d_inv_sqrt[:, None] * adj * d_inv_sqrt[None, :]
    pool = (batch[None, :] == jnp.arange(num_graphs)[:, None]).astype(jnp.float32)
    return a_norm, pool


def gcn_forward(prepared_params, x, a_norm, pool):
    out = gcn_fused(x, a_norm, pool, prepared_params)          # (G, 1)
    return out.reshape(-1)                                     # matches x.view(-1)


# ----------------------------------------------------------------------------
# Deterministic setup + run
# ----------------------------------------------------------------------------
if __name__ == "__main__":
    key = jax.random.PRNGKey(0)
    N, F, DIM, G = 16, 4, 32, 2   # nodes, num_features, hidden dim, graphs
    keys = jax.random.split(key, 8)

    # Node features
    x = jax.random.normal(keys[0], (N, F), dtype=jnp.float32)

    # Two chain graphs of 8 nodes each, undirected (both edge directions).
    srcs, dsts = [], []
    for g in range(G):
        base = g * 8
        for i in range(7):
            srcs += [base + i, base + i + 1]
            dsts += [base + i + 1, base + i]
    edge_index = jnp.array([srcs, dsts], dtype=jnp.int32)
    batch = jnp.array([0] * 8 + [1] * 8, dtype=jnp.int32)

    def init_lin(k, out_d, in_d):
        kw, kb = jax.random.split(k)
        w = jax.random.normal(kw, (out_d, in_d), jnp.float32) * 0.1
        b = jax.random.normal(kb, (out_d,), jnp.float32) * 0.1
        return w, b

    params = {}
    params["w0"], params["b0"] = init_lin(keys[1], DIM, F)       # lin0
    for i in (1, 2, 3):                                          # conv1..3
        w, b = init_lin(keys[1 + i], DIM, DIM)
        params[f"wg{i}"], params[f"bg{i}"] = w, b
    params["w1"], params["b1"] = init_lin(keys[5], DIM, DIM)     # lin1
    params["w2"], params["b2"] = init_lin(keys[6], 1, DIM)       # lin2

    # One-time prep (outside the per-call hot path)
    prepared = prepare_params(params)
    a_norm, pool = build_graph_operators(edge_index, batch, N, G)

    fwd = jax.jit(gcn_forward)
    out = fwd(prepared, x, a_norm, pool)
    jax.block_until_ready(out)
    assert out.shape == (G,), out.shape
    print("KERNEL_OK")
</pallas_src>

<mosaic_0001>
module attributes {stable_mosaic.version = 11 : i64} {
  func.func @_gcn_fused_kernel(%arg0: i32, %arg1: memref<16x4xf32, #tpu.memory_space<vmem>>, %arg2: memref<16x16xf32, #tpu.memory_space<vmem>>, %arg3: memref<2x16xf32, #tpu.memory_space<vmem>>, %arg4: memref<4x32xf32, #tpu.memory_space<vmem>>, %arg5: memref<1x32xf32, #tpu.memory_space<vmem>>, %arg6: memref<32x32xf32, #tpu.memory_space<vmem>>, %arg7: memref<1x32xf32, #tpu.memory_space<vmem>>, %arg8: memref<32x32xf32, #tpu.memory_space<vmem>>, %arg9: memref<1x32xf32, #tpu.memory_space<vmem>>, %arg10: memref<32x32xf32, #tpu.memory_space<vmem>>, %arg11: memref<1x32xf32, #tpu.memory_space<vmem>>, %arg12: memref<32x32xf32, #tpu.memory_space<vmem>>, %arg13: memref<1x32xf32, #tpu.memory_space<vmem>>, %arg14: memref<1x32xf32, #tpu.memory_space<vmem>>, %arg15: memref<1x1xf32, #tpu.memory_space<vmem>>, %arg16: memref<2x1xf32, #tpu.memory_space<vmem>>) attributes {dimension_semantics = [#tpu.dimension_semantics<arbitrary>], iteration_bounds = array<i64: 1>, scalar_prefetch = 0 : i64, scratch_operands = 0 : i64, tpu.core_type = #tpu.core_type<tc>, window_params = [{pipeline_mode = #tpu.pipeline_mode<synchronous>, transform_indices = @transform_0, window_bounds = array<i64: 16, 4>}, {pipeline_mode = #tpu.pipeline_mode<synchronous>, transform_indices = @transform_1, window_bounds = array<i64: 16, 16>}, {pipeline_mode = #tpu.pipeline_mode<synchronous>, transform_indices = @transform_2, window_bounds = array<i64: 2, 16>}, {pipeline_mode = #tpu.pipeline_mode<synchronous>, transform_indices = @transform_3, window_bounds = array<i64: 4, 32>}, {pipeline_mode = #tpu.pipeline_mode<synchronous>, transform_indices = @transform_4, window_bounds = array<i64: 1, 32>}, {pipeline_mode = #tpu.pipeline_mode<synchronous>, transform_indices = @transform_5, window_bounds = array<i64: 32, 32>}, {pipeline_mode = #tpu.pipeline_mode<synchronous>, transform_indices = @transform_6, window_bounds = array<i64: 1, 32>}, {pipeline_mode = #tpu.pipeline_mode<synchronous>, transform_indices = @transform_7, window_bounds = array<i64: 32, 32>}, {pipeline_mode = #tpu.pipeline_mode<synchronous>, transform_indices = @transform_8, window_bounds = array<i64: 1, 32>}, {pipeline_mode = #tpu.pipeline_mode<synchronous>, transform_indices = @transform_9, window_bounds = array<i64: 32, 32>}, {pipeline_mode = #tpu.pipeline_mode<synchronous>, transform_indices = @transform_10, window_bounds = array<i64: 1, 32>}, {pipeline_mode = #tpu.pipeline_mode<synchronous>, transform_indices = @transform_11, window_bounds = array<i64: 32, 32>}, {pipeline_mode = #tpu.pipeline_mode<synchronous>, transform_indices = @transform_12, window_bounds = array<i64: 1, 32>}, {pipeline_mode = #tpu.pipeline_mode<synchronous>, transform_indices = @transform_13, window_bounds = array<i64: 1, 32>}, {pipeline_mode = #tpu.pipeline_mode<synchronous>, transform_indices = @transform_14, window_bounds = array<i64: 1, 1>}, {pipeline_mode = #tpu.pipeline_mode<synchronous>, transform_indices = @transform_15, window_bounds = array<i64: 2, 1>}]} {
    %c0 = arith.constant 0 : index
    %c0_0 = arith.constant 0 : index
    %0 = vector.load %arg2[%c0, %c0_0] : memref<16x16xf32, #tpu.memory_space<vmem>>, vector<16x16xf32>
    %c0_1 = arith.constant 0 : index
    %c0_2 = arith.constant 0 : index
    %1 = vector.load %arg1[%c0_1, %c0_2] : memref<16x4xf32, #tpu.memory_space<vmem>>, vector<16x4xf32>
    %c0_3 = arith.constant 0 : index
    %c0_4 = arith.constant 0 : index
    %2 = vector.load %arg4[%c0_3, %c0_4] : memref<4x32xf32, #tpu.memory_space<vmem>>, vector<4x32xf32>
    %cst = arith.constant dense<0.000000e+00> : vector<16x32xf32>
    %3 = tpu.matmul %1, %2, %cst {dimension_numbers = #tpu.dot_dimension_numbers<[1], [0], [0], [1], [0, 0, 1, 1], [], []>} : vector<16x4xf32>, vector<4x32xf32>, vector<16x32xf32> -> vector<16x32xf32>
    %c0_5 = arith.constant 0 : index
    %c0_6 = arith.constant 0 : index
    %4 = vector.load %arg5[%c0_5, %c0_6] : memref<1x32xf32, #tpu.memory_space<vmem>>, vector<1x32xf32>
    %5 = vector.broadcast %4 : vector<1x32xf32> to vector<16x32xf32>
    %6 = arith.addf %3, %5 : vector<16x32xf32>
    %cst_7 = arith.constant 0.000000e+00 : f32
    %7 = vector.broadcast %cst_7 : f32 to vector<16x32xf32>
    %8 = arith.maximumf %6, %7 : vector<16x32xf32>
    %c0_8 = arith.constant 0 : index
    %c0_9 = arith.constant 0 : index
    %9 = vector.load %arg6[%c0_8, %c0_9] : memref<32x32xf32, #tpu.memory_space<vmem>>, vector<32x32xf32>
    %cst_10 = arith.constant dense<0.000000e+00> : vector<16x32xf32>
    %10 = tpu.matmul %8, %9, %cst_10 {dimension_numbers = #tpu.dot_dimension_numbers<[1], [0], [0], [1], [0, 0, 1, 1], [], []>} : vector<16x32xf32>, vector<32x32xf32>, vector<16x32xf32> -> vector<16x32xf32>
    %cst_11 = arith.constant dense<0.000000e+00> : vector<16x32xf32>
    %11 = tpu.matmul %0, %10, %cst_11 {dimension_numbers = #tpu.dot_dimension_numbers<[1], [0], [0], [1], [0, 0, 1, 1], [], []>} : vector<16x16xf32>, vector<16x32xf32>, vector<16x32xf32> -> vector<16x32xf32>
    %c0_12 = arith.constant 0 : index
    %c0_13 = arith.constant 0 : index
    %12 = vector.load %arg7[%c0_12, %c0_13] : memref<1x32xf32, #tpu.memory_space<vmem>>, vector<1x32xf32>
    %13 = vector.broadcast %12 : vector<1x32xf32> to vector<16x32xf32>
    %14 = arith.addf %11, %13 : vector<16x32xf32>
    %cst_14 = arith.constant 0.000000e+00 : f32
    %15 = vector.broadcast %cst_14 : f32 to vector<16x32xf32>
    %16 = arith.maximumf %14, %15 : vector<16x32xf32>
    %c0_15 = arith.constant 0 : index
    %c0_16 = arith.constant 0 : index
    %17 = vector.load %arg8[%c0_15, %c0_16] : memref<32x32xf32, #tpu.memory_space<vmem>>, vector<32x32xf32>
    %cst_17 = arith.constant dense<0.000000e+00> : vector<16x32xf32>
    %18 = tpu.matmul %16, %17, %cst_17 {dimension_numbers = #tpu.dot_dimension_numbers<[1], [0], [0], [1], [0, 0, 1, 1], [], []>} : vector<16x32xf32>, vector<32x32xf32>, vector<16x32xf32> -> vector<16x32xf32>
    %cst_18 = arith.constant dense<0.000000e+00> : vector<16x32xf32>
    %19 = tpu.matmul %0, %18, %cst_18 {dimension_numbers = #tpu.dot_dimension_numbers<[1], [0], [0], [1], [0, 0, 1, 1], [], []>} : vector<16x16xf32>, vector<16x32xf32>, vector<16x32xf32> -> vector<16x32xf32>
    %c0_19 = arith.constant 0 : index
    %c0_20 = arith.constant 0 : index
    %20 = vector.load %arg9[%c0_19, %c0_20] : memref<1x32xf32, #tpu.memory_space<vmem>>, vector<1x32xf32>
    %21 = vector.broadcast %20 : vector<1x32xf32> to vector<16x32xf32>
    %22 = arith.addf %19, %21 : vector<16x32xf32>
    %cst_21 = arith.constant 0.000000e+00 : f32
    %23 = vector.broadcast %cst_21 : f32 to vector<16x32xf32>
    %24 = arith.maximumf %22, %23 : vector<16x32xf32>
    %c0_22 = arith.constant 0 : index
    %c0_23 = arith.constant 0 : index
    %25 = vector.load %arg10[%c0_22, %c0_23] : memref<32x32xf32, #tpu.memory_space<vmem>>, vector<32x32xf32>
    %cst_24 = arith.constant dense<0.000000e+00> : vector<16x32xf32>
    %26 = tpu.matmul %24, %25, %cst_24 {dimension_numbers = #tpu.dot_dimension_numbers<[1], [0], [0], [1], [0, 0, 1, 1], [], []>} : vector<16x32xf32>, vector<32x32xf32>, vector<16x32xf32> -> vector<16x32xf32>
    %cst_25 = arith.constant dense<0.000000e+00> : vector<16x32xf32>
    %27 = tpu.matmul %0, %26, %cst_25 {dimension_numbers = #tpu.dot_dimension_numbers<[1], [0], [0], [1], [0, 0, 1, 1], [], []>} : vector<16x16xf32>, vector<16x32xf32>, vector<16x32xf32> -> vector<16x32xf32>
    %c0_26 = arith.constant 0 : index
    %c0_27 = arith.constant 0 : index
    %28 = vector.load %arg11[%c0_26, %c0_27] : memref<1x32xf32, #tpu.memory_space<vmem>>, vector<1x32xf32>
    %29 = vector.broadcast %28 : vector<1x32xf32> to vector<16x32xf32>
    %30 = arith.addf %27, %29 : vector<16x32xf32>
    %cst_28 = arith.constant 0.000000e+00 : f32
    %31 = vector.broadcast %cst_28 : f32 to vector<16x32xf32>
    %32 = arith.maximumf %30, %31 : vector<16x32xf32>
    %c0_29 = arith.constant 0 : index
    %c0_30 = arith.constant 0 : index
    %33 = vector.load %arg3[%c0_29, %c0_30] : memref<2x16xf32, #tpu.memory_space<vmem>>, vector<2x16xf32>
    %cst_31 = arith.constant dense<0.000000e+00> : vector<2x32xf32>
    %34 = tpu.matmul %33, %32, %cst_31 {dimension_numbers = #tpu.dot_dimension_numbers<[1], [0], [0], [1], [0, 0, 1, 1], [], []>} : vector<2x16xf32>, vector<16x32xf32>, vector<2x32xf32> -> vector<2x32xf32>
    %c0_32 = arith.constant 0 : index
    %c0_33 = arith.constant 0 : index
    %35 = vector.load %arg12[%c0_32, %c0_33] : memref<32x32xf32, #tpu.memory_space<vmem>>, vector<32x32xf32>
    %cst_34 = arith.constant dense<0.000000e+00> : vector<2x32xf32>
    %36 = tpu.matmul %34, %35, %cst_34 {dimension_numbers = #tpu.dot_dimension_numbers<[1], [0], [0], [1], [0, 0, 1, 1], [], []>} : vector<2x32xf32>, vector<32x32xf32>, vector<2x32xf32> -> vector<2x32xf32>
    %c0_35 = arith.constant 0 : index
    %c0_36 = arith.constant 0 : index
    %37 = vector.load %arg13[%c0_35, %c0_36] : memref<1x32xf32, #tpu.memory_space<vmem>>, vector<1x32xf32>
    %38 = vector.broadcast %37 : vector<1x32xf32> to vector<2x32xf32>
    %39 = arith.addf %36, %38 : vector<2x32xf32>
    %cst_37 = arith.constant 0.000000e+00 : f32
    %40 = vector.broadcast %cst_37 : f32 to vector<2x32xf32>
    %41 = arith.maximumf %39, %40 : vector<2x32xf32>
    %c0_38 = arith.constant 0 : index
    %c0_39 = arith.constant 0 : index
    %42 = vector.load %arg14[%c0_38, %c0_39] : memref<1x32xf32, #tpu.memory_space<vmem>>, vector<1x32xf32>
    %43 = vector.broadcast %42 : vector<1x32xf32> to vector<2x32xf32>
    %44 = arith.mulf %41, %43 : vector<2x32xf32>
    %cst_40 = arith.constant dense<0.000000e+00> : vector<2xf32>
    %45 = vector.multi_reduction <add>, %44, %cst_40 [1] : vector<2x32xf32> to vector<2xf32>
    %46 = vector.shape_cast %45 : vector<2xf32> to vector<2x1xf32>
    %c0_41 = arith.constant 0 : index
    %c0_42 = arith.constant 0 : index
    %47 = vector.load %arg15[%c0_41, %c0_42] : memref<1x1xf32, #tpu.memory_space<vmem>>, vector<1x1xf32>
    %48 = vector.broadcast %47 : vector<1x1xf32> to vector<2x1xf32>
    %49 = arith.addf %46, %48 : vector<2x1xf32>
    %c0_43 = arith.constant 0 : index
    %c0_44 = arith.constant 0 : index
    %50 = vector.load %arg16[%c0_43, %c0_44] : memref<2x1xf32, #tpu.memory_space<vmem>>, vector<2x1xf32>
    tpu.vector_store %arg16[%c0_43, %c0_44], %49 {strides = array<i32>} : memref<2x1xf32, #tpu.memory_space<vmem>>, vector<2x1xf32>,
    return
  }
  func.func @transform_0(%arg0: i32) -> (i32, i32) {
    %c0_i32 = arith.constant 0 : i32
    %c0_i32_0 = arith.constant 0 : i32
    %c0_i32_1 = arith.constant 0 : i32
    return %c0_i32, %c0_i32_0 : i32, i32
  }
  func.func @transform_1(%arg0: i32) -> (i32, i32) {
    %c0_i32 = arith.constant 0 : i32
    %c0_i32_0 = arith.constant 0 : i32
    %c0_i32_1 = arith.constant 0 : i32
    return %c0_i32, %c0_i32_0 : i32, i32
  }
  func.func @transform_2(%arg0: i32) -> (i32, i32) {
    %c0_i32 = arith.constant 0 : i32
    %c0_i32_0 = arith.constant 0 : i32
    %c0_i32_1 = arith.constant 0 : i32
    return %c0_i32, %c0_i32_0 : i32, i32
  }
  func.func @transform_3(%arg0: i32) -> (i32, i32) {
    %c0_i32 = arith.constant 0 : i32
    %c0_i32_0 = arith.constant 0 : i32
    %c0_i32_1 = arith.constant 0 : i32
    return %c0_i32, %c0_i32_0 : i32, i32
  }
  func.func @transform_4(%arg0: i32) -> (i32, i32) {
    %c0_i32 = arith.constant 0 : i32
    %c0_i32_0 = arith.constant 0 : i32
    %c0_i32_1 = arith.constant 0 : i32
    return %c0_i32, %c0_i32_0 : i32, i32
  }
  func.func @transform_5(%arg0: i32) -> (i32, i32) {
    %c0_i32 = arith.constant 0 : i32
    %c0_i32_0 = arith.constant 0 : i32
    %c0_i32_1 = arith.constant 0 : i32
    return %c0_i32, %c0_i32_0 : i32, i32
  }
  func.func @transform_6(%arg0: i32) -> (i32, i32) {
    %c0_i32 = arith.constant 0 : i32
    %c0_i32_0 = arith.constant 0 : i32
    %c0_i32_1 = arith.constant 0 : i32
    return %c0_i32, %c0_i32_0 : i32, i32
  }
  func.func @transform_7(%arg0: i32) -> (i32, i32) {
    %c0_i32 = arith.constant 0 : i32
    %c0_i32_0 = arith.constant 0 : i32
    %c0_i32_1 = arith.constant 0 : i32
    return %c0_i32, %c0_i32_0 : i32, i32
  }
  func.func @transform_8(%arg0: i32) -> (i32, i32) {
    %c0_i32 = arith.constant 0 : i32
    %c0_i32_0 = arith.constant 0 : i32
    %c0_i32_1 = arith.constant 0 : i32
    return %c0_i32, %c0_i32_0 : i32, i32
  }
  func.func @transform_9(%arg0: i32) -> (i32, i32) {
    %c0_i32 = arith.constant 0 : i32
    %c0_i32_0 = arith.constant 0 : i32
    %c0_i32_1 = arith.constant 0 : i32
    return %c0_i32, %c0_i32_0 : i32, i32
  }
  func.func @transform_10(%arg0: i32) -> (i32, i32) {
    %c0_i32 = arith.constant 0 : i32
    %c0_i32_0 = arith.constant 0 : i32
    %c0_i32_1 = arith.constant 0 : i32
    return %c0_i32, %c0_i32_0 : i32, i32
  }
  func.func @transform_11(%arg0: i32) -> (i32, i32) {
    %c0_i32 = arith.constant 0 : i32
    %c0_i32_0 = arith.constant 0 : i32
    %c0_i32_1 = arith.constant 0 : i32
    return %c0_i32, %c0_i32_0 : i32, i32
  }
  func.func @transform_12(%arg0: i32) -> (i32, i32) {
    %c0_i32 = arith.constant 0 : i32
    %c0_i32_0 = arith.constant 0 : i32
    %c0_i32_1 = arith.constant 0 : i32
    return %c0_i32, %c0_i32_0 : i32, i32
  }
  func.func @transform_13(%arg0: i32) -> (i32, i32) {
    %c0_i32 = arith.constant 0 : i32
    %c0_i32_0 = arith.constant 0 : i32
    %c0_i32_1 = arith.constant 0 : i32
    return %c0_i32, %c0_i32_0 : i32, i32
  }
  func.func @transform_14(%arg0: i32) -> (i32, i32) {
    %c0_i32 = arith.constant 0 : i32
    %c0_i32_0 = arith.constant 0 : i32
    %c0_i32_1 = arith.constant 0 : i32
    return %c0_i32, %c0_i32_0 : i32, i32
  }
  func.func @transform_15(%arg0: i32) -> (i32, i32) {
    %c0_i32 = arith.constant 0 : i32
    %c0_i32_0 = arith.constant 0 : i32
    %c0_i32_1 = arith.constant 0 : i32
    return %c0_i32, %c0_i32_0 : i32, i32
  }
}

</mosaic_0001>

<llo_original>
// kernel: gcn_forward.1
$region0: #{gcn_forward.1}
  #allocation0 [shape = 'u32[]', space=smem, size = 0x4, offset = 0x4, fixed_abs, tag = 'smem constant byte address 0x4 - core index']
  #allocation1 [shape = 'u32[144,128]{1,0:T(1,128)}', space=vmem, size = 0x12000, scoped, tag = 'internal scratch']
  #allocation2 [shape = 'f32[1,1]{1,0:T(1,128)S(1)}', space=vmem, size = 0x200, scoped, tag = 'scoped memory for gcn_forward.1']
  %s0 = inlined_call_operand.vmem [shape: f32[16,4], index: 0, kind: input, shape index: {}]
  %s1 = inlined_call_operand.hbm [shape: f32[16,16], index: 1, kind: input, shape index: {}]
  %s2 = inlined_call_operand.vmem [shape: f32[2,16], index: 2, kind: input, shape index: {}]
  %s3 = inlined_call_operand.hbm [shape: f32[4,32], index: 3, kind: input, shape index: {}]
  %s4 = inlined_call_operand.hbm [shape: f32[1,32], index: 4, kind: input, shape index: {}]
  %s5 = inlined_call_operand.vmem [shape: f32[32,32], index: 5, kind: input, shape index: {}]
  %s6 = inlined_call_operand.hbm [shape: f32[1,32], index: 6, kind: input, shape index: {}]
  %s7 = inlined_call_operand.hbm [shape: f32[32,32], index: 7, kind: input, shape index: {}]
  %s8 = inlined_call_operand.hbm [shape: f32[1,32], index: 8, kind: input, shape index: {}]
  %s9 = inlined_call_operand.hbm [shape: f32[32,32], index: 9, kind: input, shape index: {}]
  %s10 = inlined_call_operand.hbm [shape: f32[1,32], index: 10, kind: input, shape index: {}]
  %s11 = inlined_call_operand.hbm [shape: f32[32,32], index: 11, kind: input, shape index: {}]
  %s12 = inlined_call_operand.hbm [shape: f32[1,32], index: 12, kind: input, shape index: {}]
  %s13 = inlined_call_operand.hbm [shape: f32[1,32], index: 13, kind: input, shape index: {}]
  %s14 = inlined_call_operand.<no memory space> [shape: f32[1,1], index: 14, kind: input, shape index: {}]
  %s15 = inlined_call_operand.vmem [shape: f32[2,1], index: 15, kind: output, shape index: {}]
  %s16 = sld [smem:[#allocation0]]
  $region114: #{gcn_forward.1} parent=0
    _
  %s18 = ssub.s32 1, %s16
  %s19 = scalar_select 0, %s18, %s16
  %v20 = vstv %s14
  %21 = vst [vmem:[#allocation2] sm:$0x1] %v20
  $region1: #{gcn_forward.1} parent=0
    #allocation3 [shape = 'u8[8192]{0}', space=vmem, size = 0x2000, scoped, tag = 'input window, operand 1, single buffered']
    #allocation4 [shape = 's32[1]{0}', space=sflag, size = 0x4, scoped, tag = 'scoped memory for gcn_forward.1']
    #allocation5 [shape = 'u8[2048]{0}', space=vmem, size = 0x800, scoped, tag = 'input window, operand 3, single buffered']
    #allocation6 [shape = 's32[1]{0}', space=sflag, size = 0x4, scoped, tag = 'scoped memory for gcn_forward.1']
    #allocation7 [shape = 'u8[512]{0}', space=vmem, size = 0x400, scoped, tag = 'input window, operand 4, single buffered']
    #allocation8 [shape = 'u8[512]{0}', space=vmem, size = 0x400, scoped, tag = 'input window, operand 6, single buffered']
    #allocation9 [shape = 's32[1]{0}', space=sflag, size = 0x4, scoped, tag = 'scoped memory for gcn_forward.1']
    #allocation10 [shape = 'u8[16384]{0}', space=vmem, size = 0x4000, scoped, tag = 'input window, operand 7, single buffered']
    #allocation11 [shape = 'u8[512]{0}', space=vmem, size = 0x400, scoped, tag = 'input window, operand 8, single buffered']
    #allocation12 [shape = 's32[1]{0}', space=sflag, size = 0x4, scoped, tag = 'scoped memory for gcn_forward.1']
    #allocation13 [shape = 'u8[16384]{0}', space=vmem, size = 0x4000, scoped, tag = 'input window, operand 9, single buffered']
    #allocation14 [shape = 'u8[512]{0}', space=vmem, size = 0x400, scoped, tag = 'input window, operand 10, single buffered']
    #allocation15 [shape = 's32[1]{0}', space=sflag, size = 0x4, scoped, tag = 'scoped memory for gcn_forward.1']
    #allocation16 [shape = 'u8[16384]{0}', space=vmem, size = 0x4000, scoped, tag = 'input window, operand 11, single buffered']
    #allocation17 [shape = 'u8[512]{0}', space=vmem, size = 0x400, scoped, tag = 'input window, operand 12, single buffered']
    #allocation18 [shape = 's32[1]{0}', space=sflag, size = 0x4, scoped, tag = 'scoped memory for gcn_forward.1']
    #allocation19 [shape = 'u8[512]{0}', space=vmem, size = 0x400, scoped, tag = 'input window, operand 13, single buffered']
    %22 = vsyncpa [#allocation4], 0
    %23 = vsyncpa [#allocation6], 0
    %24 = vsyncpa [#allocation9], 0
    %25 = vsyncpa [#allocation12], 0
    %26 = vsyncpa [#allocation15], 0
    %27 = vsyncpa [#allocation18], 0
    // Predicated region
    $region2: #{gcn_forward.1} parent=1 // pred_check
      _
    $region3: #{gcn_forward.1} parent=1 // pred_check_branch
      %29 = sbr.rel (0) target = $region5
    $region4: #{gcn_forward.1} parent=1 // pred_region
      _
    $region5: #{gcn_forward.1} parent=1 // pred_fallthru
      _
    // Predicated region
    $region6: #{gcn_forward.1} parent=1 // pred_check
      _
    $region7: #{gcn_forward.1} parent=1 // pred_check_branch
      %31 = sbr.rel (0) target = $region9
    $region8: #{gcn_forward.1} parent=1 // pred_region
      %s33 = ssub.s32 256, 256
      %34 = vsyncadd [#allocation4], %s33
      %s35 = sshll.u32 [#allocation3], 4
      %s36 = int_to_ptr.vmem [resolvable:$true] %s35
      %41 = dma.hbm_to_vmem [thread:$0]  %s1, 256, %s36, [#allocation4], 128, 128, 8
    $region9: #{gcn_forward.1} parent=1 // pred_fallthru
      _
    // Predicated region
    $region10: #{gcn_forward.1} parent=1 // pred_check
      _
    $region11: #{gcn_forward.1} parent=1 // pred_check_branch
      %43 = sbr.rel (0) target = $region13
    $region12: #{gcn_forward.1} parent=1 // pred_region
      _
    $region13: #{gcn_forward.1} parent=1 // pred_fallthru
      _
    // Predicated region
    $region14: #{gcn_forward.1} parent=1 // pred_check
      _
    $region15: #{gcn_forward.1} parent=1 // pred_check_branch
      %45 = sbr.rel (0) target = $region17
    $region16: #{gcn_forward.1} parent=1 // pred_region
      %s47 = ssub.s32 64, 64
      %48 = vsyncadd [#allocation6], %s47
      %s50 = sshll.u32 [#allocation5], 4
      %s51 = int_to_ptr.vmem [resolvable:$true] %s50
      %53 = dma.hbm_to_vmem [thread:$0]  %s3, 64, %s51, [#allocation6]
    $region17: #{gcn_forward.1} parent=1 // pred_fallthru
      _
    // Predicated region
    $region18: #{gcn_forward.1} parent=1 // pred_check
      _
    $region19: #{gcn_forward.1} parent=1 // pred_check_branch
      %55 = sbr.rel (0) target = $region21
    $region20: #{gcn_forward.1} parent=1 // pred_region
      %s57 = ssub.s32 16, 16
      %58 = vsyncadd [#allocation6], %s57
      %s60 = sshll.u32 [#allocation7], 4
      %s61 = int_to_ptr.vmem [resolvable:$true] %s60
      %63 = dma.hbm_to_vmem [thread:$0]  %s4, 16, %s61, [#allocation6]
    $region21: #{gcn_forward.1} parent=1 // pred_fallthru
      _
    // Predicated region
    $region22: #{gcn_forward.1} parent=1 // pred_check
      _
    $region23: #{gcn_forward.1} parent=1 // pred_check_branch
      %65 = sbr.rel (0) target = $region25
    $region24: #{gcn_forward.1} parent=1 // pred_region
      _
    $region25: #{gcn_forward.1} parent=1 // pred_fallthru
      _
    // Predicated region
    $region26: #{gcn_forward.1} parent=1 // pred_check
      _
    $region27: #{gcn_forward.1} parent=1 // pred_check_branch
      %67 = sbr.rel (0) target = $region29
    $region28: #{gcn_forward.1} parent=1 // pred_region
      %s69 = ssub.s32 16, 16
      %70 = vsyncadd [#allocation9], %s69
      %s72 = sshll.u32 [#allocation8], 4
      %s73 = int_to_ptr.vmem [resolvable:$true] %s72
      %75 = dma.hbm_to_vmem [thread:$0]  %s6, 16, %s73, [#allocation9]
    $region29: #{gcn_forward.1} parent=1 // pred_fallthru
      _
    // Predicated region
    $region30: #{gcn_forward.1} parent=1 // pred_check
      _
    $region31: #{gcn_forward.1} parent=1 // pred_check_branch
      %77 = sbr.rel (0) target = $region33
    $region32: #{gcn_forward.1} parent=1 // pred_region
      %s79 = ssub.s32 512, 512
      %80 = vsyncadd [#allocation9], %s79
      %s81 = sshll.u32 [#allocation10], 4
      %s82 = int_to_ptr.vmem [resolvable:$true] %s81
      %87 = dma.hbm_to_vmem [thread:$0]  %s7, 512, %s82, [#allocation9], 128, 128, 8
    $region33: #{gcn_forward.1} parent=1 // pred_fallthru
      _
    // Predicated region
    $region34: #{gcn_forward.1} parent=1 // pred_check
      _
    $region35: #{gcn_forward.1} parent=1 // pred_check_branch
      %89 = sbr.rel (0) target = $region37
    $region36: #{gcn_forward.1} parent=1 // pred_region
      %s91 = ssub.s32 16, 16
      %92 = vsyncadd [#allocation12], %s91
      %s94 = sshll.u32 [#allocation11], 4
      %s95 = int_to_ptr.vmem [resolvable:$true] %s94
      %97 = dma.hbm_to_vmem [thread:$0]  %s8, 16, %s95, [#allocation12]
    $region37: #{gcn_forward.1} parent=1 // pred_fallthru
      _
    // Predicated region
    $region38: #{gcn_forward.1} parent=1 // pred_check
      _
    $region39: #{gcn_forward.1} parent=1 // pred_check_branch
      %99 = sbr.rel (0) target = $region41
    $region40: #{gcn_forward.1} parent=1 // pred_region
      %s101 = ssub.s32 512, 512
      %102 = vsyncadd [#allocation12], %s101
      %s103 = sshll.u32 [#allocation13], 4
      %s104 = int_to_ptr.vmem [resolvable:$true] %s103
      %109 = dma.hbm_to_vmem [thread:$0]  %s9, 512, %s104, [#allocation12], 128, 128, 8
    $region41: #{gcn_forward.1} parent=1 // pred_fallthru
      _
    // Predicated region
    $region42: #{gcn_forward.1} parent=1 // pred_check
      _
    $region43: #{gcn_forward.1} parent=1 // pred_check_branch
      %111 = sbr.rel (0) target = $region45
    $region44: #{gcn_forward.1} parent=1 // pred_region
      %s113 = ssub.s32 16, 16
      %114 = vsyncadd [#allocation15], %s113
      %s116 = sshll.u32 [#allocation14], 4
      %s117 = int_to_ptr.vmem [resolvable:$true] %s116
      %119 = dma.hbm_to_vmem [thread:$0]  %s10, 16, %s117, [#allocation15]
    $region45: #{gcn_forward.1} parent=1 // pred_fallthru
      _
    // Predicated region
    $region46: #{gcn_forward.1} parent=1 // pred_check
      _
    $region47: #{gcn_forward.1} parent=1 // pred_check_branch
      %121 = sbr.rel (0) target = $region49
    $region48: #{gcn_forward.1} parent=1 // pred_region
      %s123 = ssub.s32 512, 512
      %124 = vsyncadd [#allocation15], %s123
      %s125 = sshll.u32 [#allocation16], 4
      %s126 = int_to_ptr.vmem [resolvable:$true] %s125
      %131 = dma.hbm_to_vmem [thread:$0]  %s11, 512, %s126, [#allocation15], 128, 128, 8
    $region49: #{gcn_forward.1} parent=1 // pred_fallthru
      _
    // Predicated region
    $region50: #{gcn_forward.1} parent=1 // pred_check
      _
    $region51: #{gcn_forward.1} parent=1 // pred_check_branch
      %133 = sbr.rel (0) target = $region53
    $region52: #{gcn_forward.1} parent=1 // pred_region
      %s135 = ssub.s32 16, 16
      %136 = vsyncadd [#allocation18], %s135
      %s138 = sshll.u32 [#allocation17], 4
      %s139 = int_to_ptr.vmem [resolvable:$true] %s138
      %141 = dma.hbm_to_vmem [thread:$0]  %s12, 16, %s139, [#allocation18]
    $region53: #{gcn_forward.1} parent=1 // pred_fallthru
      _
    // Predicated region
    $region54: #{gcn_forward.1} parent=1 // pred_check
      _
    $region55: #{gcn_forward.1} parent=1 // pred_check_branch
      %143 = sbr.rel (0) target = $region57
    $region56: #{gcn_forward.1} parent=1 // pred_region
      %s145 = ssub.s32 16, 16
      %146 = vsyncadd [#allocation18], %s145
      %s148 = sshll.u32 [#allocation19], 4
      %s149 = int_to_ptr.vmem [resolvable:$true] %s148
      %151 = dma.hbm_to_vmem [thread:$0]  %s13, 16, %s149, [#allocation18]
    $region57: #{gcn_forward.1} parent=1 // pred_fallthru
      _
    // Predicated region
    $region58: #{gcn_forward.1} parent=1 // pred_check
      _
    $region59: #{gcn_forward.1} parent=1 // pred_check_branch
      %153 = sbr.rel (0) target = $region61
    $region60: #{gcn_forward.1} parent=1 // pred_region
      _
    $region61: #{gcn_forward.1} parent=1 // pred_fallthru
      _
    // Predicated region
    $region62: #{gcn_forward.1} parent=1 // pred_check
      _
    $region63: #{gcn_forward.1} parent=1 // pred_check_branch
      %155 = sbr.rel (0) target = $region65
    $region64: #{gcn_forward.1} parent=1 // pred_region
      %156 = dma.done [#allocation4], 256
    $region65: #{gcn_forward.1} parent=1 // pred_fallthru
      _
    // Predicated region
    $region66: #{gcn_forward.1} parent=1 // pred_check
      _
    $region67: #{gcn_forward.1} parent=1 // pred_check_branch
      %158 = sbr.rel (0) target = $region69
    $region68: #{gcn_forward.1} parent=1 // pred_region
      %159 = dma.done [#allocation6], 64
    $region69: #{gcn_forward.1} parent=1 // pred_fallthru
      _
    // Predicated region
    $region70: #{gcn_forward.1} parent=1 // pred_check
      _
    $region71: #{gcn_forward.1} parent=1 // pred_check_branch
      %161 = sbr.rel (0) target = $region73
    $region72: #{gcn_forward.1} parent=1 // pred_region
      %162 = dma.done [#allocation6], 16
    $region73: #{gcn_forward.1} parent=1 // pred_fallthru
      _
    // Predicated region
    $region74: #{gcn_forward.1} parent=1 // pred_check
      _
    $region75: #{gcn_forward.1} parent=1 // pred_check_branch
      %164 = sbr.rel (0) target = $region77
    $region76: #{gcn_forward.1} parent=1 // pred_region
      %165 = dma.done [#allocation9], 16
    $region77: #{gcn_forward.1} parent=1 // pred_fallthru
      _
    // Predicated region
    $region78: #{gcn_forward.1} parent=1 // pred_check
      _
    $region79: #{gcn_forward.1} parent=1 // pred_check_branch
      %167 = sbr.rel (0) target = $region81
    $region80: #{gcn_forward.1} parent=1 // pred_region
      %168 = dma.done [#allocation9], 512
    $region81: #{gcn_forward.1} parent=1 // pred_fallthru
      _
    // Predicated region
    $region82: #{gcn_forward.1} parent=1 // pred_check
      _
    $region83: #{gcn_forward.1} parent=1 // pred_check_branch
      %170 = sbr.rel (0) target = $region85
    $region84: #{gcn_forward.1} parent=1 // pred_region
      %171 = dma.done [#allocation12], 16
    $region85: #{gcn_forward.1} parent=1 // pred_fallthru
      _
    // Predicated region
    $region86: #{gcn_forward.1} parent=1 // pred_check
      _
    $region87: #{gcn_forward.1} parent=1 // pred_check_branch
      %173 = sbr.rel (0) target = $region89
    $region88: #{gcn_forward.1} parent=1 // pred_region
      %174 = dma.done [#allocation12], 512
    $region89: #{gcn_forward.1} parent=1 // pred_fallthru
      _
    // Predicated region
    $region90: #{gcn_forward.1} parent=1 // pred_check
      _
    $region91: #{gcn_forward.1} parent=1 // pred_check_branch
      %176 = sbr.rel (0) target = $region93
    $region92: #{gcn_forward.1} parent=1 // pred_region
      %177 = dma.done [#allocation15], 16
    $region93: #{gcn_forward.1} parent=1 // pred_fallthru
      _
    // Predicated region
    $region94: #{gcn_forward.1} parent=1 // pred_check
      _
    $region95: #{gcn_forward.1} parent=1 // pred_check_branch
      %179 = sbr.rel (0) target = $region97
    $region96: #{gcn_forward.1} parent=1 // pred_region
      %180 = dma.done [#allocation15], 512
    $region97: #{gcn_forward.1} parent=1 // pred_fallthru
      _
    // Predicated region
    $region98: #{gcn_forward.1} parent=1 // pred_check
      _
    $region99: #{gcn_forward.1} parent=1 // pred_check_branch
      %182 = sbr.rel (0) target = $region101
    $region100: #{gcn_forward.1} parent=1 // pred_region
      %183 = dma.done [#allocation18], 16
    $region101: #{gcn_forward.1} parent=1 // pred_fallthru
      _
    // Predicated region
    $region102: #{gcn_forward.1} parent=1 // pred_check
      _
    $region103: #{gcn_forward.1} parent=1 // pred_check_branch
      %185 = sbr.rel (0) target = $region105
    $region104: #{gcn_forward.1} parent=1 // pred_region
      %186 = dma.done [#allocation18], 16
    $region105: #{gcn_forward.1} parent=1 // pred_fallthru
      _
    %v187 = vld [vmem:[#allocation3] sm:$0xff]
    %v188 = vld [vmem:[#allocation3 + $0x8] sm:$0xff]
    %v189 = vld [vmem:[%s0] sm:$0xff]
    %v190 = vld [vmem:[%s0 + $0x8] sm:$0xff]
    %v191 = vld [vmem:[#allocation5] sm:$0xf]
    %v192 = vld [vmem:[#allocation7] sm:$0x1]
    %v194 = vlaneseq
    %v195 = vshrl.u32 %v194, 7
    %v196 = vsub.s32 0, %v195
    %v197 = vrot.slane %v192, %v196
    %vm199 = vcmask 31744
    %v201 = vsel %vm199, %v189, 0
    %v204 = vsel %vm199, %v190, 0
    %vm206 = vcmask 1043456
    %v208 = vsel %vm206, %v191, 0
    %210 = vmatprep.subr.mxu0 0.0
    %211 = vmatpush1.msra.mxu0 0.0
    %212 = vmatprep.subr.mxu0 0.0
    %213 = vmatpush1.msra.mxu0 0.0
    %214 = vmatprep.subr.mxu0 0.0
    %215 = vmatpush1.msra.mxu0 0.0
    %216 = vmatprep.subr.mxu0 0.0
    %217 = vmatpush1.msra.mxu0 0.0
    %218 = vmatprep.subr.mxu0 0.0
    %219 = vmatpush1.msra.mxu0 0.0
    %220 = vmatprep.subr.mxu0 0.0
    %221 = vmatpush1.msra.mxu0 0.0
    %222 = vmatprep.subr.mxu0 0.0
    %223 = vmatpush1.msra.mxu0 0.0
    %224 = vmatprep.subr.mxu0 0.0
    %225 = vmatpush1.msra.mxu0 0.0
    %226 = vmatprep.subr.mxu0 0.0
    %227 = vmatpush1.msra.mxu0 0.0
    %228 = vmatprep.subr.mxu0 0.0
    %229 = vmatpush1.msra.mxu0 0.0
    %230 = vmatprep.subr.mxu0 0.0
    %231 = vmatpush1.msra.mxu0 0.0
    %232 = vmatprep.subr.mxu0 0.0
    %233 = vmatpush1.msra.mxu0 0.0
    %234 = vmatprep.subr.mxu0 0.0
    %235 = vmatpush1.msra.mxu0 0.0
    %236 = vmatprep.subr.mxu0 0.0
    %237 = vmatpush1.msra.mxu0 0.0
    %238 = vmatprep.subr.mxu0 0.0
    %239 = vmatpush1.msra.mxu0 0.0
    %240 = vmatprep.subr.mxu0 0.0
    %241 = vmatpush1.msra.mxu0 %v208
    %242 = vmatprep.subr.mxu0 0.0
    %243 = vmatpush2.msra.mxu0 0.0
    %244 = vmatprep.subr.mxu0 0.0
    %245 = vmatpush2.msra.mxu0 0.0
    %246 = vmatprep.subr.mxu0 0.0
    %247 = vmatpush2.msra.mxu0 0.0
    %248 = vmatprep.subr.mxu0 0.0
    %249 = vmatpush2.msra.mxu0 0.0
    %250 = vmatprep.subr.mxu0 0.0
    %251 = vmatpush2.msra.mxu0 0.0
    %252 = vmatprep.subr.mxu0 0.0
    %253 = vmatpush2.msra.mxu0 0.0
    %254 = vmatprep.subr.mxu0 0.0
    %255 = vmatpush2.msra.mxu0 0.0
    %256 = vmatprep.subr.mxu0 0.0
    %257 = vmatpush2.msra.mxu0 0.0
    %258 = vmatprep.subr.mxu0 0.0
    %259 = vmatpush2.msra.mxu0 0.0
    %260 = vmatprep.subr.mxu0 0.0
    %261 = vmatpush2.msra.mxu0 0.0
    %262 = vmatprep.subr.mxu0 0.0
    %263 = vmatpush2.msra.mxu0 0.0
    %264 = vmatprep.subr.mxu0 0.0
    %265 = vmatpush2.msra.mxu0 0.0
    %266 = vmatprep.subr.mxu0 0.0
    %267 = vmatpush2.msra.mxu0 0.0
    %268 = vmatprep.subr.mxu0 0.0
    %269 = vmatpush2.msra.mxu0 0.0
    %270 = vmatprep.subr.mxu0 0.0
    %271 = vmatpush2.msra.mxu0 0.0
    %272 = vmatprep.subr.mxu0 0.0
    %273 = vmatpush2.msra.mxu0 0.0
    %274 = vmatprep.mubr.f32.mxu0 0.0
    %275 = vmatmul.mubr.f32.gmra.mxu0 %v201
    %v276 = vpop.f32.mrf.mxu0
    %v277 = vadd.f32 %v197, %v276
    %v278 = vpop.f32.mrf.mxu0
    %279 = vmatprep.mubr.f32.mxu0 0.0
    %280 = vmatmul.mubr.f32.gmra.mxu0 %v204
    %v281 = vpop.f32.mrf.mxu0
    %v282 = vadd.f32 %v197, %v281
    %v283 = vpop.f32.mrf.mxu0
    %284 = vdwg.mxu0
    %v285 = vmax.f32 %v277, 0.0
    %v286 = vmax.f32 %v282, 0.0
    %v287 = vld [vmem:[%s5] sm:$0xff]
    %v288 = vld [vmem:[%s5 + $0x8] sm:$0xff]
    %v289 = vld [vmem:[%s5 + $0x10] sm:$0xff]
    %v290 = vld [vmem:[%s5 + $0x18] sm:$0xff]
    %vm291 = vcmask 261120
    %v293 = vsel %vm291, %v285, 0
    %v296 = vsel %vm291, %v286, 0
    %298 = vmatprep.subr.mxu0 0.0
    %299 = vmatpush1.msra.mxu0 0.0
    %300 = vmatprep.subr.mxu0 0.0
    %301 = vmatpush1.msra.mxu0 0.0
    %302 = vmatprep.subr.mxu0 0.0
    %303 = vmatpush1.msra.mxu0 0.0
    %304 = vmatprep.subr.mxu0 0.0
    %305 = vmatpush1.msra.mxu0 0.0
    %306 = vmatprep.subr.mxu0 0.0
    %307 = vmatpush1.msra.mxu0 0.0
    %308 = vmatprep.subr.mxu0 0.0
    %309 = vmatpush1.msra.mxu0 0.0
    %310 = vmatprep.subr.mxu0 0.0
    %311 = vmatpush1.msra.mxu0 0.0
    %312 = vmatprep.subr.mxu0 0.0
    %313 = vmatpush1.msra.mxu0 0.0
    %314 = vmatprep.subr.mxu0 0.0
    %315 = vmatpush1.msra.mxu0 0.0
    %316 = vmatprep.subr.mxu0 0.0
    %317 = vmatpush1.msra.mxu0 0.0
    %318 = vmatprep.subr.mxu0 0.0
    %319 = vmatpush1.msra.mxu0 0.0
    %320 = vmatprep.subr.mxu0 0.0
    %321 = vmatpush1.msra.mxu0 0.0
    %322 = vmatprep.subr.mxu0 0.0
    %323 = vmatpush1.msra.mxu0 %v290
    %324 = vmatprep.subr.mxu0 0.0
    %325 = vmatpush1.msra.mxu0 %v289
    %326 = vmatprep.subr.mxu0 0.0
    %327 = vmatpush1.msra.mxu0 %v288
    %328 = vmatprep.subr.mxu0 0.0
    %329 = vmatpush1.msra.mxu0 %v287
    %330 = vmatprep.subr.mxu0 0.0
    %331 = vmatpush2.msra.mxu0 0.0
    %332 = vmatprep.subr.mxu0 0.0
    %333 = vmatpush2.msra.mxu0 0.0
    %334 = vmatprep.subr.mxu0 0.0
    %335 = vmatpush2.msra.mxu0 0.0
    %336 = vmatprep.subr.mxu0 0.0
    %337 = vmatpush2.msra.mxu0 0.0
    %338 = vmatprep.subr.mxu0 0.0
    %339 = vmatpush2.msra.mxu0 0.0
    %340 = vmatprep.subr.mxu0 0.0
    %341 = vmatpush2.msra.mxu0 0.0
    %342 = vmatprep.subr.mxu0 0.0
    %343 = vmatpush2.msra.mxu0 0.0
    %344 = vmatprep.subr.mxu0 0.0
    %345 = vmatpush2.msra.mxu0 0.0
    %346 = vmatprep.subr.mxu0 0.0
    %347 = vmatpush2.msra.mxu0 0.0
    %348 = vmatprep.subr.mxu0 0.0
    %349 = vmatpush2.msra.mxu0 0.0
    %350 = vmatprep.subr.mxu0 0.0
    %351 = vmatpush2.msra.mxu0 0.0
    %352 = vmatprep.subr.mxu0 0.0
    %353 = vmatpush2.msra.mxu0 0.0
    %354 = vmatprep.subr.mxu0 0.0
    %355 = vmatpush2.msra.mxu0 0.0
    %356 = vmatprep.subr.mxu0 0.0
    %357 = vmatpush2.msra.mxu0 0.0
    %358 = vmatprep.subr.mxu0 0.0
    %359 = vmatpush2.msra.mxu0 0.0
    %360 = vmatprep.subr.mxu0 0.0
    %361 = vmatpush2.msra.mxu0 0.0
    %362 = vmatprep.mubr.f32.mxu0 0.0
    %363 = vmatmul.mubr.f32.gmra.mxu0 %v293
    %v364 = vpop.f32.mrf.mxu0
    %v365 = vadd.f32 0.0, %v364
    %v366 = vpop.f32.mrf.mxu0
    %367 = vmatprep.mubr.f32.mxu0 0.0
    %368 = vmatmul.mubr.f32.gmra.mxu0 %v296
    %v369 = vpop.f32.mrf.mxu0
    %v370 = vadd.f32 0.0, %v369
    %v371 = vpop.f32.mrf.mxu0
    %372 = vdwg.mxu0
    %v373 = vld [vmem:[#allocation8] sm:$0x1]
    %v375 = vlaneseq
    %v376 = vshrl.u32 %v375, 7
    %v377 = vsub.s32 0, %v376
    %v378 = vrot.slane %v373, %v377
    %vm380 = vcmask 130048
    %v382 = vsel %vm380, %v187, 0
    %v385 = vsel %vm380, %v188, 0
    %387 = vmatprep.subr.mxu0 0.0
    %388 = vmatpush1.msra.mxu0 0.0
    %389 = vmatprep.subr.mxu0 0.0
    %390 = vmatpush1.msra.mxu0 0.0
    %391 = vmatprep.subr.mxu0 0.0
    %392 = vmatpush1.msra.mxu0 0.0
    %393 = vmatprep.subr.mxu0 0.0
    %394 = vmatpush1.msra.mxu0 0.0
    %395 = vmatprep.subr.mxu0 0.0
    %396 = vmatpush1.msra.mxu0 0.0
    %397 = vmatprep.subr.mxu0 0.0
    %398 = vmatpush1.msra.mxu0 0.0
    %399 = vmatprep.subr.mxu0 0.0
    %400 = vmatpush1.msra.mxu0 0.0
    %401 = vmatprep.subr.mxu0 0.0
    %402 = vmatpush1.msra.mxu0 0.0
    %403 = vmatprep.subr.mxu0 0.0
    %404 = vmatpush1.msra.mxu0 0.0
    %405 = vmatprep.subr.mxu0 0.0
    %406 = vmatpush1.msra.mxu0 0.0
    %407 = vmatprep.subr.mxu0 0.0
    %408 = vmatpush1.msra.mxu0 0.0
    %409 = vmatprep.subr.mxu0 0.0
    %410 = vmatpush1.msra.mxu0 0.0
    %411 = vmatprep.subr.mxu0 0.0
    %412 = vmatpush1.msra.mxu0 0.0
    %413 = vmatprep.subr.mxu0 0.0
    %414 = vmatpush1.msra.mxu0 0.0
    %415 = vmatprep.subr.mxu0 0.0
    %416 = vmatpush1.msra.mxu0 %v370
    %417 = vmatprep.subr.mxu0 0.0
    %418 = vmatpush1.msra.mxu0 %v365
    %419 = vmatprep.subr.mxu0 0.0
    %420 = vmatpush2.msra.mxu0 0.0
    %421 = vmatprep.subr.mxu0 0.0
    %422 = vmatpush2.msra.mxu0 0.0
    %423 = vmatprep.subr.mxu0 0.0
    %424 = vmatpush2.msra.mxu0 0.0
    %425 = vmatprep.subr.mxu0 0.0
    %426 = vmatpush2.msra.mxu0 0.0
    %427 = vmatprep.subr.mxu0 0.0
    %428 = vmatpush2.msra.mxu0 0.0
    %429 = vmatprep.subr.mxu0 0.0
    %430 = vmatpush2.msra.mxu0 0.0
    %431 = vmatprep.subr.mxu0 0.0
    %432 = vmatpush2.msra.mxu0 0.0
    %433 = vmatprep.subr.mxu0 0.0
    %434 = vmatpush2.msra.mxu0 0.0
    %435 = vmatprep.subr.mxu0 0.0
    %436 = vmatpush2.msra.mxu0 0.0
    %437 = vmatprep.subr.mxu0 0.0
    %438 = vmatpush2.msra.mxu0 0.0
    %439 = vmatprep.subr.mxu0 0.0
    %440 = vmatpush2.msra.mxu0 0.0
    %441 = vmatprep.subr.mxu0 0.0
    %442 = vmatpush2.msra.mxu0 0.0
    %443 = vmatprep.subr.mxu0 0.0
    %444 = vmatpush2.msra.mxu0 0.0
    %445 = vmatprep.subr.mxu0 0.0
    %446 = vmatpush2.msra.mxu0 0.0
    %447 = vmatprep.subr.mxu0 0.0
    %448 = vmatpush2.msra.mxu0 0.0
    %449 = vmatprep.subr.mxu0 0.0
    %450 = vmatpush2.msra.mxu0 0.0
    %451 = vmatprep.mubr.f32.mxu0 0.0
    %452 = vmatmul.mubr.f32.gmra.mxu0 %v382
    %v453 = vpop.f32.mrf.mxu0
    %v454 = vadd.f32 %v378, %v453
    %v455 = vpop.f32.mrf.mxu0
    %456 = vmatprep.mubr.f32.mxu0 0.0
    %457 = vmatmul.mubr.f32.gmra.mxu0 %v385
    %v458 = vpop.f32.mrf.mxu0
    %v459 = vadd.f32 %v378, %v458
    %v460 = vpop.f32.mrf.mxu0
    %461 = vdwg.mxu0
    %v462 = vmax.f32 %v454, 0.0
    %v463 = vmax.f32 %v459, 0.0
    %v464 = vld [vmem:[#allocation10] sm:$0xff]
    %v465 = vld [vmem:[#allocation10 + $0x8] sm:$0xff]
    %v466 = vld [vmem:[#allocation10 + $0x10] sm:$0xff]
    %v467 = vld [vmem:[#allocation10 + $0x18] sm:$0xff]
    %v469 = vsel %vm291, %v462, 0
    %v472 = vsel %vm291, %v463, 0
    %474 = vmatprep.subr.mxu0 0.0
    %475 = vmatpush1.msra.mxu0 0.0
    %476 = vmatprep.subr.mxu0 0.0
    %477 = vmatpush1.msra.mxu0 0.0
    %478 = vmatprep.subr.mxu0 0.0
    %479 = vmatpush1.msra.mxu0 0.0
    %480 = vmatprep.subr.mxu0 0.0
    %481 = vmatpush1.msra.mxu0 0.0
    %482 = vmatprep.subr.mxu0 0.0
    %483 = vmatpush1.msra.mxu0 0.0
    %484 = vmatprep.subr.mxu0 0.0
    %485 = vmatpush1.msra.mxu0 0.0
    %486 = vmatprep.subr.mxu0 0.0
    %487 = vmatpush1.msra.mxu0 0.0
    %488 = vmatprep.subr.mxu0 0.0
    %489 = vmatpush1.msra.mxu0 0.0
    %490 = vmatprep.subr.mxu0 0.0
    %491 = vmatpush1.msra.mxu0 0.0
    %492 = vmatprep.subr.mxu0 0.0
    %493 = vmatpush1.msra.mxu0 0.0
    %494 = vmatprep.subr.mxu0 0.0
    %495 = vmatpush1.msra.mxu0 0.0
    %496 = vmatprep.subr.mxu0 0.0
    %497 = vmatpush1.msra.mxu0 0.0
    %498 = vmatprep.subr.mxu0 0.0
    %499 = vmatpush1.msra.mxu0 %v467
    %500 = vmatprep.subr.mxu0 0.0
    %501 = vmatpush1.msra.mxu0 %v466
    %502 = vmatprep.subr.mxu0 0.0
    %503 = vmatpush1.msra.mxu0 %v465
    %504 = vmatprep.subr.mxu0 0.0
    %505 = vmatpush1.msra.mxu0 %v464
    %506 = vmatprep.subr.mxu0 0.0
    %507 = vmatpush2.msra.mxu0 0.0
    %508 = vmatprep.subr.mxu0 0.0
    %509 = vmatpush2.msra.mxu0 0.0
    %510 = vmatprep.subr.mxu0 0.0
    %511 = vmatpush2.msra.mxu0 0.0
    %512 = vmatprep.subr.mxu0 0.0
    %513 = vmatpush2.msra.mxu0 0.0
    %514 = vmatprep.subr.mxu0 0.0
    %515 = vmatpush2.msra.mxu0 0.0
    %516 = vmatprep.subr.mxu0 0.0
    %517 = vmatpush2.msra.mxu0 0.0
    %518 = vmatprep.subr.mxu0 0.0
    %519 = vmatpush2.msra.mxu0 0.0
    %520 = vmatprep.subr.mxu0 0.0
    %521 = vmatpush2.msra.mxu0 0.0
    %522 = vmatprep.subr.mxu0 0.0
    %523 = vmatpush2.msra.mxu0 0.0
    %524 = vmatprep.subr.mxu0 0.0
    %525 = vmatpush2.msra.mxu0 0.0
    %526 = vmatprep.subr.mxu0 0.0
    %527 = vmatpush2.msra.mxu0 0.0
    %528 = vmatprep.subr.mxu0 0.0
    %529 = vmatpush2.msra.mxu0 0.0
    %530 = vmatprep.subr.mxu0 0.0
    %531 = vmatpush2.msra.mxu0 0.0
    %532 = vmatprep.subr.mxu0 0.0
    %533 = vmatpush2.msra.mxu0 0.0
    %534 = vmatprep.subr.mxu0 0.0
    %535 = vmatpush2.msra.mxu0 0.0
    %536 = vmatprep.subr.mxu0 0.0
    %537 = vmatpush2.msra.mxu0 0.0
    %538 = vmatprep.mubr.f32.mxu0 0.0
    %539 = vmatmul.mubr.f32.gmra.mxu0 %v469
    %v540 = vpop.f32.mrf.mxu0
    %v541 = vadd.f32 0.0, %v540
    %v542 = vpop.f32.mrf.mxu0
    %543 = vmatprep.mubr.f32.mxu0 0.0
    %544 = vmatmul.mubr.f32.gmra.mxu0 %v472
    %v545 = vpop.f32.mrf.mxu0
    %v546 = vadd.f32 0.0, %v545
    %v547 = vpop.f32.mrf.mxu0
    %548 = vdwg.mxu0
    %v549 = vld [vmem:[#allocation11] sm:$0x1]
    %v551 = vlaneseq
    %v552 = vshrl.u32 %v551, 7
    %v553 = vsub.s32 0, %v552
    %v554 = vrot.slane %v549, %v553
    %556 = vmatprep.subr.mxu0 0.0
    %557 = vmatpush1.msra.mxu0 0.0
    %558 = vmatprep.subr.mxu0 0.0
    %559 = vmatpush1.msra.mxu0 0.0
    %560 = vmatprep.subr.mxu0 0.0
    %561 = vmatpush1.msra.mxu0 0.0
    %562 = vmatprep.subr.mxu0 0.0
    %563 = vmatpush1.msra.mxu0 0.0
    %564 = vmatprep.subr.mxu0 0.0
    %565 = vmatpush1.msra.mxu0 0.0
    %566 = vmatprep.subr.mxu0 0.0
    %567 = vmatpush1.msra.mxu0 0.0
    %568 = vmatprep.subr.mxu0 0.0
    %569 = vmatpush1.msra.mxu0 0.0
    %570 = vmatprep.subr.mxu0 0.0
    %571 = vmatpush1.msra.mxu0 0.0
    %572 = vmatprep.subr.mxu0 0.0
    %573 = vmatpush1.msra.mxu0 0.0
    %574 = vmatprep.subr.mxu0 0.0
    %575 = vmatpush1.msra.mxu0 0.0
    %576 = vmatprep.subr.mxu0 0.0
    %577 = vmatpush1.msra.mxu0 0.0
    %578 = vmatprep.subr.mxu0 0.0
    %579 = vmatpush1.msra.mxu0 0.0
    %580 = vmatprep.subr.mxu0 0.0
    %581 = vmatpush1.msra.mxu0 0.0
    %582 = vmatprep.subr.mxu0 0.0
    %583 = vmatpush1.msra.mxu0 0.0
    %584 = vmatprep.subr.mxu0 0.0
    %585 = vmatpush1.msra.mxu0 %v546
    %586 = vmatprep.subr.mxu0 0.0
    %587 = vmatpush1.msra.mxu0 %v541
    %588 = vmatprep.subr.mxu0 0.0
    %589 = vmatpush2.msra.mxu0 0.0
    %590 = vmatprep.subr.mxu0 0.0
    %591 = vmatpush2.msra.mxu0 0.0
    %592 = vmatprep.subr.mxu0 0.0
    %593 = vmatpush2.msra.mxu0 0.0
    %594 = vmatprep.subr.mxu0 0.0
    %595 = vmatpush2.msra.mxu0 0.0
    %596 = vmatprep.subr.mxu0 0.0
    %597 = vmatpush2.msra.mxu0 0.0
    %598 = vmatprep.subr.mxu0 0.0
    %599 = vmatpush2.msra.mxu0 0.0
    %600 = vmatprep.subr.mxu0 0.0
    %601 = vmatpush2.msra.mxu0 0.0
    %602 = vmatprep.subr.mxu0 0.0
    %603 = vmatpush2.msra.mxu0 0.0
    %604 = vmatprep.subr.mxu0 0.0
    %605 = vmatpush2.msra.mxu0 0.0
    %606 = vmatprep.subr.mxu0 0.0
    %607 = vmatpush2.msra.mxu0 0.0
    %608 = vmatprep.subr.mxu0 0.0
    %609 = vmatpush2.msra.mxu0 0.0
    %610 = vmatprep.subr.mxu0 0.0
    %611 = vmatpush2.msra.mxu0 0.0
    %612 = vmatprep.subr.mxu0 0.0
    %613 = vmatpush2.msra.mxu0 0.0
    %614 = vmatprep.subr.mxu0 0.0
    %615 = vmatpush2.msra.mxu0 0.0
    %616 = vmatprep.subr.mxu0 0.0
    %617 = vmatpush2.msra.mxu0 0.0
    %618 = vmatprep.subr.mxu0 0.0
    %619 = vmatpush2.msra.mxu0 0.0
    %620 = vmatprep.mubr.f32.mxu0 0.0
    %621 = vmatmul.mubr.f32.gmra.mxu0 %v382
    %v622 = vpop.f32.mrf.mxu0
    %v623 = vadd.f32 %v554, %v622
    %v624 = vpop.f32.mrf.mxu0
    %625 = vmatprep.mubr.f32.mxu0 0.0
    %626 = vmatmul.mubr.f32.gmra.mxu0 %v385
    %v627 = vpop.f32.mrf.mxu0
    %v628 = vadd.f32 %v554, %v627
    %v629 = vpop.f32.mrf.mxu0
    %630 = vdwg.mxu0
    %v631 = vmax.f32 %v623, 0.0
    %v632 = vmax.f32 %v628, 0.0
    %v633 = vld [vmem:[#allocation13] sm:$0xff]
    %v634 = vld [vmem:[#allocation13 + $0x8] sm:$0xff]
    %v635 = vld [vmem:[#allocation13 + $0x10] sm:$0xff]
    %v636 = vld [vmem:[#allocation13 + $0x18] sm:$0xff]
    %v638 = vsel %vm291, %v631, 0
    %v641 = vsel %vm291, %v632, 0
    %643 = vmatprep.subr.mxu0 0.0
    %644 = vmatpush1.msra.mxu0 0.0
    %645 = vmatprep.subr.mxu0 0.0
    %646 = vmatpush1.msra.mxu0 0.0
    %647 = vmatprep.subr.mxu0 0.0
    %648 = vmatpush1.msra.mxu0 0.0
    %649 = vmatprep.subr.mxu0 0.0
    %650 = vmatpush1.msra.mxu0 0.0
    %651 = vmatprep.subr.mxu0 0.0
    %652 = vmatpush1.msra.mxu0 0.0
    %653 = vmatprep.subr.mxu0 0.0
    %654 = vmatpush1.msra.mxu0 0.0
    %655 = vmatprep.subr.mxu0 0.0
    %656 = vmatpush1.msra.mxu0 0.0
    %657 = vmatprep.subr.mxu0 0.0
    %658 = vmatpush1.msra.mxu0 0.0
    %659 = vmatprep.subr.mxu0 0.0
    %660 = vmatpush1.msra.mxu0 0.0
    %661 = vmatprep.subr.mxu0 0.0
    %662 = vmatpush1.msra.mxu0 0.0
    %663 = vmatprep.subr.mxu0 0.0
    %664 = vmatpush1.msra.mxu0 0.0
    %665 = vmatprep.subr.mxu0 0.0
    %666 = vmatpush1.msra.mxu0 0.0
    %667 = vmatprep.subr.mxu0 0.0
    %668 = vmatpush1.msra.mxu0 %v636
    %669 = vmatprep.subr.mxu0 0.0
    %670 = vmatpush1.msra.mxu0 %v635
    %671 = vmatprep.subr.mxu0 0.0
    %672 = vmatpush1.msra.mxu0 %v634
    %673 = vmatprep.subr.mxu0 0.0
    %674 = vmatpush1.msra.mxu0 %v633
    %675 = vmatprep.subr.mxu0 0.0
    %676 = vmatpush2.msra.mxu0 0.0
    %677 = vmatprep.subr.mxu0 0.0
    %678 = vmatpush2.msra.mxu0 0.0
    %679 = vmatprep.subr.mxu0 0.0
    %680 = vmatpush2.msra.mxu0 0.0
    %681 = vmatprep.subr.mxu0 0.0
    %682 = vmatpush2.msra.mxu0 0.0
    %683 = vmatprep.subr.mxu0 0.0
    %684 = vmatpush2.msra.mxu0 0.0
    %685 = vmatprep.subr.mxu0 0.0
    %686 = vmatpush2.msra.mxu0 0.0
    %687 = vmatprep.subr.mxu0 0.0
    %688 = vmatpush2.msra.mxu0 0.0
    %689 = vmatprep.subr.mxu0 0.0
    %690 = vmatpush2.msra.mxu0 0.0
    %691 = vmatprep.subr.mxu0 0.0
    %692 = vmatpush2.msra.mxu0 0.0
    %693 = vmatprep.subr.mxu0 0.0
    %694 = vmatpush2.msra.mxu0 0.0
    %695 = vmatprep.subr.mxu0 0.0
    %696 = vmatpush2.msra.mxu0 0.0
    %697 = vmatprep.subr.mxu0 0.0
    %698 = vmatpush2.msra.mxu0 0.0
    %699 = vmatprep.subr.mxu0 0.0
    %700 = vmatpush2.msra.mxu0 0.0
    %701 = vmatprep.subr.mxu0 0.0
    %702 = vmatpush2.msra.mxu0 0.0
    %703 = vmatprep.subr.mxu0 0.0
    %704 = vmatpush2.msra.mxu0 0.0
    %705 = vmatprep.subr.mxu0 0.0
    %706 = vmatpush2.msra.mxu0 0.0
    %707 = vmatprep.mubr.f32.mxu0 0.0
    %708 = vmatmul.mubr.f32.gmra.mxu0 %v638
    %v709 = vpop.f32.mrf.mxu0
    %v710 = vadd.f32 0.0, %v709
    %v711 = vpop.f32.mrf.mxu0
    %712 = vmatprep.mubr.f32.mxu0 0.0
    %713 = vmatmul.mubr.f32.gmra.mxu0 %v641
    %v714 = vpop.f32.mrf.mxu0
    %v715 = vadd.f32 0.0, %v714
    %v716 = vpop.f32.mrf.mxu0
    %717 = vdwg.mxu0
    %v718 = vld [vmem:[#allocation14] sm:$0x1]
    %v720 = vlaneseq
    %v721 = vshrl.u32 %v720, 7
    %v722 = vsub.s32 0, %v721
    %v723 = vrot.slane %v718, %v722
    %725 = vmatprep.subr.mxu0 0.0
    %726 = vmatpush1.msra.mxu0 0.0
    %727 = vmatprep.subr.mxu0 0.0
    %728 = vmatpush1.msra.mxu0 0.0
    %729 = vmatprep.subr.mxu0 0.0
    %730 = vmatpush1.msra.mxu0 0.0
    %731 = vmatprep.subr.mxu0 0.0
    %732 = vmatpush1.msra.mxu0 0.0
    %733 = vmatprep.subr.mxu0 0.0
    %734 = vmatpush1.msra.mxu0 0.0
    %735 = vmatprep.subr.mxu0 0.0
    %736 = vmatpush1.msra.mxu0 0.0
    %737 = vmatprep.subr.mxu0 0.0
    %738 = vmatpush1.msra.mxu0 0.0
    %739 = vmatprep.subr.mxu0 0.0
    %740 = vmatpush1.msra.mxu0 0.0
    %741 = vmatprep.subr.mxu0 0.0
    %742 = vmatpush1.msra.mxu0 0.0
    %743 = vmatprep.subr.mxu0 0.0
    %744 = vmatpush1.msra.mxu0 0.0
    %745 = vmatprep.subr.mxu0 0.0
    %746 = vmatpush1.msra.mxu0 0.0
    %747 = vmatprep.subr.mxu0 0.0
    %748 = vmatpush1.msra.mxu0 0.0
    %749 = vmatprep.subr.mxu0 0.0
    %750 = vmatpush1.msra.mxu0 0.0
    %751 = vmatprep.subr.mxu0 0.0
    %752 = vmatpush1.msra.mxu0 0.0
    %753 = vmatprep.subr.mxu0 0.0
    %754 = vmatpush1.msra.mxu0 %v715
    %755 = vmatprep.subr.mxu0 0.0
    %756 = vmatpush1.msra.mxu0 %v710
    %757 = vmatprep.subr.mxu0 0.0
    %758 = vmatpush2.msra.mxu0 0.0
    %759 = vmatprep.subr.mxu0 0.0
    %760 = vmatpush2.msra.mxu0 0.0
    %761 = vmatprep.subr.mxu0 0.0
    %762 = vmatpush2.msra.mxu0 0.0
    %763 = vmatprep.subr.mxu0 0.0
    %764 = vmatpush2.msra.mxu0 0.0
    %765 = vmatprep.subr.mxu0 0.0
    %766 = vmatpush2.msra.mxu0 0.0
    %767 = vmatprep.subr.mxu0 0.0
    %768 = vmatpush2.msra.mxu0 0.0
    %769 = vmatprep.subr.mxu0 0.0
    %770 = vmatpush2.msra.mxu0 0.0
    %771 = vmatprep.subr.mxu0 0.0
    %772 = vmatpush2.msra.mxu0 0.0
    %773 = vmatprep.subr.mxu0 0.0
    %774 = vmatpush2.msra.mxu0 0.0
    %775 = vmatprep.subr.mxu0 0.0
    %776 = vmatpush2.msra.mxu0 0.0
    %777 = vmatprep.subr.mxu0 0.0
    %778 = vmatpush2.msra.mxu0 0.0
    %779 = vmatprep.subr.mxu0 0.0
    %780 = vmatpush2.msra.mxu0 0.0
    %781 = vmatprep.subr.mxu0 0.0
    %782 = vmatpush2.msra.mxu0 0.0
    %783 = vmatprep.subr.mxu0 0.0
    %784 = vmatpush2.msra.mxu0 0.0
    %785 = vmatprep.subr.mxu0 0.0
    %786 = vmatpush2.msra.mxu0 0.0
    %787 = vmatprep.subr.mxu0 0.0
    %788 = vmatpush2.msra.mxu0 0.0
    %789 = vmatprep.mubr.f32.mxu0 0.0
    %790 = vmatmul.mubr.f32.gmra.mxu0 %v382
    %v791 = vpop.f32.mrf.mxu0
    %v792 = vadd.f32 %v723, %v791
    %v793 = vpop.f32.mrf.mxu0
    %794 = vmatprep.mubr.f32.mxu0 0.0
    %795 = vmatmul.mubr.f32.gmra.mxu0 %v385
    %v796 = vpop.f32.mrf.mxu0
    %v797 = vadd.f32 %v723, %v796
    %v798 = vpop.f32.mrf.mxu0
    %799 = vdwg.mxu0
    %v800 = vmax.f32 %v792, 0.0
    %v801 = vmax.f32 %v797, 0.0
    %v802 = vld [vmem:[%s2] sm:$0x3]
    %v804 = vsel %vm380, %v802, 0
    %806 = vmatprep.subr.mxu0 0.0
    %807 = vmatpush1.msra.mxu0 0.0
    %808 = vmatprep.subr.mxu0 0.0
    %809 = vmatpush1.msra.mxu0 0.0
    %810 = vmatprep.subr.mxu0 0.0
    %811 = vmatpush1.msra.mxu0 0.0
    %812 = vmatprep.subr.mxu0 0.0
    %813 = vmatpush1.msra.mxu0 0.0
    %814 = vmatprep.subr.mxu0 0.0
    %815 = vmatpush1.msra.mxu0 0.0
    %816 = vmatprep.subr.mxu0 0.0
    %817 = vmatpush1.msra.mxu0 0.0
    %818 = vmatprep.subr.mxu0 0.0
    %819 = vmatpush1.msra.mxu0 0.0
    %820 = vmatprep.subr.mxu0 0.0
    %821 = vmatpush1.msra.mxu0 0.0
    %822 = vmatprep.subr.mxu0 0.0
    %823 = vmatpush1.msra.mxu0 0.0
    %824 = vmatprep.subr.mxu0 0.0
    %825 = vmatpush1.msra.mxu0 0.0
    %826 = vmatprep.subr.mxu0 0.0
    %827 = vmatpush1.msra.mxu0 0.0
    %828 = vmatprep.subr.mxu0 0.0
    %829 = vmatpush1.msra.mxu0 0.0
    %830 = vmatprep.subr.mxu0 0.0
    %831 = vmatpush1.msra.mxu0 0.0
    %832 = vmatprep.subr.mxu0 0.0
    %833 = vmatpush1.msra.mxu0 0.0
    %834 = vmatprep.subr.mxu0 0.0
    %835 = vmatpush1.msra.mxu0 %v801
    %836 = vmatprep.subr.mxu0 0.0
    %837 = vmatpush1.msra.mxu0 %v800
    %838 = vmatprep.subr.mxu0 0.0
    %839 = vmatpush2.msra.mxu0 0.0
    %840 = vmatprep.subr.mxu0 0.0
    %841 = vmatpush2.msra.mxu0 0.0
    %842 = vmatprep.subr.mxu0 0.0
    %843 = vmatpush2.msra.mxu0 0.0
    %844 = vmatprep.subr.mxu0 0.0
    %845 = vmatpush2.msra.mxu0 0.0
    %846 = vmatprep.subr.mxu0 0.0
    %847 = vmatpush2.msra.mxu0 0.0
    %848 = vmatprep.subr.mxu0 0.0
    %849 = vmatpush2.msra.mxu0 0.0
    %850 = vmatprep.subr.mxu0 0.0
    %851 = vmatpush2.msra.mxu0 0.0
    %852 = vmatprep.subr.mxu0 0.0
    %853 = vmatpush2.msra.mxu0 0.0
    %854 = vmatprep.subr.mxu0 0.0
    %855 = vmatpush2.msra.mxu0 0.0
    %856 = vmatprep.subr.mxu0 0.0
    %857 = vmatpush2.msra.mxu0 0.0
    %858 = vmatprep.subr.mxu0 0.0
    %859 = vmatpush2.msra.mxu0 0.0
    %860 = vmatprep.subr.mxu0 0.0
    %861 = vmatpush2.msra.mxu0 0.0
    %862 = vmatprep.subr.mxu0 0.0
    %863 = vmatpush2.msra.mxu0 0.0
    %864 = vmatprep.subr.mxu0 0.0
    %865 = vmatpush2.msra.mxu0 0.0
    %866 = vmatprep.subr.mxu0 0.0
    %867 = vmatpush2.msra.mxu0 0.0
    %868 = vmatprep.subr.mxu0 0.0
    %869 = vmatpush2.msra.mxu0 0.0
    %870 = vmatprep.mubr.f32.mxu0 0.0
    %871 = vmatmul.mubr.f32.gmra.mxu0 %v804
    %v872 = vpop.f32.mrf.mxu0
    %v873 = vadd.f32 0.0, %v872
    %v874 = vpop.f32.mrf.mxu0
    %875 = vdwg.mxu0
    %v876 = vld [vmem:[#allocation16] sm:$0xff]
    %v877 = vld [vmem:[#allocation16 + $0x8] sm:$0xff]
    %v878 = vld [vmem:[#allocation16 + $0x10] sm:$0xff]
    %v879 = vld [vmem:[#allocation16 + $0x18] sm:$0xff]
    %v880 = vld [vmem:[#allocation17] sm:$0x1]
    %v882 = vlaneseq
    %v883 = vshrl.u32 %v882, 7
    %v884 = vsub.s32 0, %v883
    %v885 = vrot.slane %v880, %v884
    %v888 = vsel %vm291, %v873, 0
    %890 = vmatprep.subr.mxu0 0.0
    %891 = vmatpush1.msra.mxu0 0.0
    %892 = vmatprep.subr.mxu0 0.0
    %893 = vmatpush1.msra.mxu0 0.0
    %894 = vmatprep.subr.mxu0 0.0
    %895 = vmatpush1.msra.mxu0 0.0
    %896 = vmatprep.subr.mxu0 0.0
    %897 = vmatpush1.msra.mxu0 0.0
    %898 = vmatprep.subr.mxu0 0.0
    %899 = vmatpush1.msra.mxu0 0.0
    %900 = vmatprep.subr.mxu0 0.0
    %901 = vmatpush1.msra.mxu0 0.0
    %902 = vmatprep.subr.mxu0 0.0
    %903 = vmatpush1.msra.mxu0 0.0
    %904 = vmatprep.subr.mxu0 0.0
    %905 = vmatpush1.msra.mxu0 0.0
    %906 = vmatprep.subr.mxu0 0.0
    %907 = vmatpush1.msra.mxu0 0.0
    %908 = vmatprep.subr.mxu0 0.0
    %909 = vmatpush1.msra.mxu0 0.0
    %910 = vmatprep.subr.mxu0 0.0
    %911 = vmatpush1.msra.mxu0 0.0
    %912 = vmatprep.subr.mxu0 0.0
    %913 = vmatpush1.msra.mxu0 0.0
    %914 = vmatprep.subr.mxu0 0.0
    %915 = vmatpush1.msra.mxu0 %v879
    %916 = vmatprep.subr.mxu0 0.0
    %917 = vmatpush1.msra.mxu0 %v878
    %918 = vmatprep.subr.mxu0 0.0
    %919 = vmatpush1.msra.mxu0 %v877
    %920 = vmatprep.subr.mxu0 0.0
    %921 = vmatpush1.msra.mxu0 %v876
    %922 = vmatprep.subr.mxu0 0.0
    %923 = vmatpush2.msra.mxu0 0.0
    %924 = vmatprep.subr.mxu0 0.0
    %925 = vmatpush2.msra.mxu0 0.0
    %926 = vmatprep.subr.mxu0 0.0
    %927 = vmatpush2.msra.mxu0 0.0
    %928 = vmatprep.subr.mxu0 0.0
    %929 = vmatpush2.msra.mxu0 0.0
    %930 = vmatprep.subr.mxu0 0.0
    %931 = vmatpush2.msra.mxu0 0.0
    %932 = vmatprep.subr.mxu0 0.0
    %933 = vmatpush2.msra.mxu0 0.0
    %934 = vmatprep.subr.mxu0 0.0
    %935 = vmatpush2.msra.mxu0 0.0
    %936 = vmatprep.subr.mxu0 0.0
    %937 = vmatpush2.msra.mxu0 0.0
    %938 = vmatprep.subr.mxu0 0.0
    %939 = vmatpush2.msra.mxu0 0.0
    %940 = vmatprep.subr.mxu0 0.0
    %941 = vmatpush2.msra.mxu0 0.0
    %942 = vmatprep.subr.mxu0 0.0
    %943 = vmatpush2.msra.mxu0 0.0
    %944 = vmatprep.subr.mxu0 0.0
    %945 = vmatpush2.msra.mxu0 0.0
    %946 = vmatprep.subr.mxu0 0.0
    %947 = vmatpush2.msra.mxu0 0.0
    %948 = vmatprep.subr.mxu0 0.0
    %949 = vmatpush2.msra.mxu0 0.0
    %950 = vmatprep.subr.mxu0 0.0
    %951 = vmatpush2.msra.mxu0 0.0
    %952 = vmatprep.subr.mxu0 0.0
    %953 = vmatpush2.msra.mxu0 0.0
    %954 = vmatprep.mubr.f32.mxu0 0.0
    %955 = vmatmul.mubr.f32.gmra.mxu0 %v888
    %v956 = vpop.f32.mrf.mxu0
    %v957 = vadd.f32 %v885, %v956
    %v958 = vpop.f32.mrf.mxu0
    %959 = vdwg.mxu0
    %v960 = vmax.f32 %v957, 0.0
    %v961 = vld [vmem:[#allocation19] sm:$0x1]
    %v963 = vlaneseq
    %v964 = vshrl.u32 %v963, 7
    %v965 = vsub.s32 0, %v964
    %v966 = vrot.slane %v961, %v965
    %v968 = vmul.f32 %v960, %v966
    %vm969 = vcmask 254976
    %v970 = vsel %vm969, %v968, 0.0
    %971 = vadd.xlane.f32.xlu0 %v970
    %v972 = vpop.xlane.xlu0 %971
    %v973 = vld [vmem:[#allocation2] sm:$0x1]
    %v975 = vlaneseq
    %v976 = vshrl.u32 %v975, 7
    %v977 = vsub.s32 0, %v976
    %v978 = vrot.slane %v973, %v977
    %v980 = vadd.f32 %v972, %v978
    %vm981 = vcmask 1024
    %982 = vst.msk [vmem:[%s15] sm:$0x3] %vm981, %v980
    // Predicated region
    $region106: #{gcn_forward.1} parent=1 // pred_check
      _
    $region107: #{gcn_forward.1} parent=1 // pred_check_branch
      %984 = sbr.rel (0) target = $region109
    $region108: #{gcn_forward.1} parent=1 // pred_region
      _
    $region109: #{gcn_forward.1} parent=1 // pred_fallthru
      _
    // Predicated region
    $region110: #{gcn_forward.1} parent=1 // pred_check
      _
    $region111: #{gcn_forward.1} parent=1 // pred_check_branch
      %986 = sbr.rel (0) target = $region113
    $region112: #{gcn_forward.1} parent=1 // pred_region
      _
    $region113: #{gcn_forward.1} parent=1 // pred_fallthru
      _
    %987 = vsyncpa [#allocation4], 1
    %988 = vsyncpa [#allocation6], 1
    %989 = vsyncpa [#allocation9], 1
    %990 = vsyncpa [#allocation12], 1
    %991 = vsyncpa [#allocation15], 1
    %992 = vsyncpa [#allocation18], 1

</llo_original>
